<compile_context>
chip_gen: v7x
topology: tpu7x:2x2x1
jax: 0.10.0
libtpu: 0.0.40
codegen_flags: <defaults>
</compile_context>

<pallas_src>
import functools

import jax
import jax.numpy as jnp
from jax import lax
from jax.experimental import pallas as pl
from jax.experimental.pallas import tpu as pltpu


def _round_up(n, m):
    return (n + m - 1) // m * m


def discriminator_kernel(x_ref,
                         w1_ref, b1_ref,
                         w2_ref, b2_ref,
                         w3_ref, b3_ref,
                         w4_ref, b4_ref,
                         o_ref):
    """One batch tile; all weights/biases are VMEM-resident full blocks."""

    def lrelu(t):  # LeakyReLU(0.2); keep f32 on the VPU (v5e has no bf16 VPU)
        return jnp.where(t > 0, t, 0.2 * t)

    # Cast x to bf16 inside the kernel (hidden under the input DMA), not in the wrapper.
    x = x_ref[...].astype(jnp.bfloat16)

    # Layers 1-3: bf16 operands into the MXU, f32 accumulation, f32 activations.
    h = jnp.dot(x, w1_ref[...], preferred_element_type=jnp.float32) + b1_ref[...]
    h = lrelu(h).astype(jnp.bfloat16)
    h = jnp.dot(h, w2_ref[...], preferred_element_type=jnp.float32) + b2_ref[...]
    h = lrelu(h).astype(jnp.bfloat16)
    h = jnp.dot(h, w3_ref[...], preferred_element_type=jnp.float32) + b3_ref[...]
    h = lrelu(h)                                              # (block_m, H1) f32

    # Layer 4 (out_features == 1): contract over H1 without materializing h.T so
    # the result is a lane-dense (1, block_m) tile -> unmasked full-width store.
    z = lax.dot_general(w4_ref[...], h,
                        dimension_numbers=(((1,), (1,)), ((), ())),
                        preferred_element_type=jnp.float32) + b4_ref[...]
    # Exact sigmoid (tiny layer; exact reciprocal keeps probabilities <= 1.0).
    p = pl.reciprocal(1.0 + jnp.exp(-z), approx=False)
    o_ref[...] = p.astype(o_ref.dtype)


@functools.partial(jax.jit, static_argnames=("max_block_m",))
def discriminator_forward(x, params, max_block_m=2048):
    """x: (B, in_features) f32 -> sigmoid probs, shape (B, 1) f32."""
    assert max_block_m % 128 == 0
    w1, b1, w2, b2, w3, b3, w4, b4 = params
    B, F = x.shape
    H3, H2, H1 = w1.shape[1], w2.shape[1], w3.shape[1]

    # Batch tile: multiple of 128 (lane-dense output), as large as max_block_m.
    # Keep >= 2 grid steps when the batch supports it so both v7x TCs get work.
    b128 = _round_up(B, 128)
    block_m = min(max_block_m, b128)
    if b128 // block_m < 2 and b128 >= 256:
        block_m = _round_up(b128 // 2, 128)
    n_tiles = pl.cdiv(B, block_m)
    B_out = n_tiles * block_m  # output columns (full tiles; tail sliced off below)

    # bf16 MXU operands for the weights (tiny arrays); biases + final row stay f32.
    w1b = w1.astype(jnp.bfloat16)
    w2b = w2.astype(jnp.bfloat16)
    w3b = w3.astype(jnp.bfloat16)
    w4r = w4.reshape(1, -1).astype(jnp.float32)   # (1, H1) row for layer 4

    full = lambda a: pl.BlockSpec(a.shape, lambda i: (0, 0))

    flops = 2 * B_out * (F * H3 + H3 * H2 + H2 * H1 + H1)
    bytes_accessed = (B * F * 4                            # x (f32, read once)
                      + (F * H3 + H3 * H2 + H2 * H1) * 2   # bf16 weights
                      + (H1 + H3 + H2 + H1 + 1) * 4        # w4 row + biases (f32)
                      + B_out * 4)                         # output (f32)

    out = pl.pallas_call(
        discriminator_kernel,
        out_shape=jax.ShapeDtypeStruct((1, B_out), jnp.float32),
        grid_spec=pltpu.PrefetchScalarGridSpec(
            num_scalar_prefetch=0,
            grid=(n_tiles,),
            in_specs=[
                # x batch tile; ragged tail handled by Pallas OOB semantics
                # (garbage rows only feed output columns that are sliced off).
                pl.BlockSpec((block_m, F), lambda i: (i, 0)),
                full(w1b), full(b1),
                full(w2b), full(b2),
                full(w3b), full(b3),
                full(w4r), full(b4),
            ],
            # Lane-dense output: batch on the lane axis, single row.
            out_specs=pl.BlockSpec((1, block_m), lambda i: (0, i)),
        ),
        compiler_params=pltpu.CompilerParams(
            dimension_semantics=("parallel",),
            vmem_limit_bytes=32 * 1024 * 1024),
        cost_estimate=pl.CostEstimate(
            flops=flops, transcendentals=2 * B_out, bytes_accessed=bytes_accessed),
    )(x, w1b, b1, w2b, b2, w3b, b3, w4r, b4)

    # Back to the PyTorch module's (B, 1) layout; drop the tile padding.
    return out.reshape(-1, 1)[:B]


def init_params(key, in_features, h3, h2, h1):
    """nn.Linear-style U(-1/sqrt(fan_in), 1/sqrt(fan_in)) init.

    Weights returned pre-transposed to (in_features, out_features)."""
    dims = [(in_features, h3), (h3, h2), (h2, h1), (h1, 1)]
    params = []
    for fan_in, fan_out in dims:
        key, kw, kb = jax.random.split(key, 3)
        bound = 1.0 / float(fan_in) ** 0.5
        w = jax.random.uniform(kw, (fan_in, fan_out), jnp.float32, -bound, bound)
        b = jax.random.uniform(kb, (1, fan_out), jnp.float32, -bound, bound)
        params += [w, b]
    return tuple(params)


def reference_forward(x, params):
    w1, b1, w2, b2, w3, b3, w4, b4 = params
    lrelu = lambda t: jnp.where(t > 0, t, 0.2 * t)
    h = lrelu(x @ w1 + b1)
    h = lrelu(h @ w2 + b2)
    h = lrelu(h @ w3 + b3)
    return jax.nn.sigmoid(h @ w4 + b4)


if __name__ == "__main__":
    # config: img_size=16 -> 256 input features; hidden_size3/2/1 = 256/128/64 -> 1.
    img_size = 16
    h3, h2, h1 = 256, 128, 64

    key = jax.random.PRNGKey(0)
    key, kp = jax.random.split(key)
    params = init_params(kp, img_size * img_size, h3, h2, h1)

    # Batches exercising: single (padded) tile, ragged multi-tile grid, and the
    # "split into >=2 tiles" path for mid-sized batches.
    for batch in (8, 300, 2500):
        key, kx = jax.random.split(key)
        x = jax.random.normal(kx, (batch, img_size * img_size), jnp.float32)

        out = jax.block_until_ready(discriminator_forward(x, params))
        ref = reference_forward(x, params)

        assert out.shape == (batch, 1), out.shape
        err = float(jnp.max(jnp.abs(out - ref)))
        # bf16 MXU matmuls vs f32 reference -> loose-ish tolerance.
        assert err < 2e-2, err

    print("KERNEL_OK")
</pallas_src>

<mosaic_0001>
module attributes {stable_mosaic.version = 11 : i64} {
  func.func @discriminator_kernel(%arg0: i32, %arg1: memref<128x256xf32, #tpu.memory_space<vmem>>, %arg2: memref<256x256xbf16, #tpu.memory_space<vmem>>, %arg3: memref<1x256xf32, #tpu.memory_space<vmem>>, %arg4: memref<256x128xbf16, #tpu.memory_space<vmem>>, %arg5: memref<1x128xf32, #tpu.memory_space<vmem>>, %arg6: memref<128x64xbf16, #tpu.memory_space<vmem>>, %arg7: memref<1x64xf32, #tpu.memory_space<vmem>>, %arg8: memref<1x64xf32, #tpu.memory_space<vmem>>, %arg9: memref<1x1xf32, #tpu.memory_space<vmem>>, %arg10: memref<1x128xf32, #tpu.memory_space<vmem>>) attributes {dimension_semantics = [#tpu.dimension_semantics<parallel>], iteration_bounds = array<i64: 1>, scalar_prefetch = 0 : i64, scratch_operands = 0 : i64, tpu.core_type = #tpu.core_type<tc>, window_params = [{transform_indices = @transform_0, window_bounds = array<i64: 128, 256>}, {pipeline_mode = #tpu.pipeline_mode<synchronous>, transform_indices = @transform_1, window_bounds = array<i64: 256, 256>}, {pipeline_mode = #tpu.pipeline_mode<synchronous>, transform_indices = @transform_2, window_bounds = array<i64: 1, 256>}, {pipeline_mode = #tpu.pipeline_mode<synchronous>, transform_indices = @transform_3, window_bounds = array<i64: 256, 128>}, {pipeline_mode = #tpu.pipeline_mode<synchronous>, transform_indices = @transform_4, window_bounds = array<i64: 1, 128>}, {pipeline_mode = #tpu.pipeline_mode<synchronous>, transform_indices = @transform_5, window_bounds = array<i64: 128, 64>}, {pipeline_mode = #tpu.pipeline_mode<synchronous>, transform_indices = @transform_6, window_bounds = array<i64: 1, 64>}, {pipeline_mode = #tpu.pipeline_mode<synchronous>, transform_indices = @transform_7, window_bounds = array<i64: 1, 64>}, {pipeline_mode = #tpu.pipeline_mode<synchronous>, transform_indices = @transform_8, window_bounds = array<i64: 1, 1>}, {transform_indices = @transform_9, window_bounds = array<i64: 1, 128>}]} {
    %c0 = arith.constant 0 : index
    %c0_0 = arith.constant 0 : index
    %0 = vector.load %arg1[%c0, %c0_0] : memref<128x256xf32, #tpu.memory_space<vmem>>, vector<128x256xf32>
    %1 = arith.truncf %0 : vector<128x256xf32> to vector<128x256xbf16>
    %c0_1 = arith.constant 0 : index
    %c0_2 = arith.constant 0 : index
    %2 = vector.load %arg2[%c0_1, %c0_2] : memref<256x256xbf16, #tpu.memory_space<vmem>>, vector<256x256xbf16>
    %cst = arith.constant dense<0.000000e+00> : vector<128x256xf32>
    %3 = tpu.matmul %1, %2, %cst {dimension_numbers = #tpu.dot_dimension_numbers<[1], [0], [0], [1], [0, 0, 1, 1], [], []>} : vector<128x256xbf16>, vector<256x256xbf16>, vector<128x256xf32> -> vector<128x256xf32>
    %c0_3 = arith.constant 0 : index
    %c0_4 = arith.constant 0 : index
    %4 = vector.load %arg3[%c0_3, %c0_4] : memref<1x256xf32, #tpu.memory_space<vmem>>, vector<1x256xf32>
    %5 = vector.broadcast %4 : vector<1x256xf32> to vector<128x256xf32>
    %6 = arith.addf %3, %5 : vector<128x256xf32>
    %cst_5 = arith.constant 0.000000e+00 : f32
    %7 = vector.broadcast %cst_5 : f32 to vector<128x256xf32>
    %8 = arith.cmpf ogt, %6, %7 : vector<128x256xf32>
    %cst_6 = arith.constant 2.000000e-01 : f32
    %9 = vector.broadcast %cst_6 : f32 to vector<128x256xf32>
    %10 = arith.mulf %9, %6 : vector<128x256xf32>
    %11 = arith.select %8, %6, %10 : vector<128x256xi1>, vector<128x256xf32>
    %12 = arith.truncf %11 : vector<128x256xf32> to vector<128x256xbf16>
    %c0_7 = arith.constant 0 : index
    %c0_8 = arith.constant 0 : index
    %13 = vector.load %arg4[%c0_7, %c0_8] : memref<256x128xbf16, #tpu.memory_space<vmem>>, vector<256x128xbf16>
    %cst_9 = arith.constant dense<0.000000e+00> : vector<128x128xf32>
    %14 = tpu.matmul %12, %13, %cst_9 {dimension_numbers = #tpu.dot_dimension_numbers<[1], [0], [0], [1], [0, 0, 1, 1], [], []>} : vector<128x256xbf16>, vector<256x128xbf16>, vector<128x128xf32> -> vector<128x128xf32>
    %c0_10 = arith.constant 0 : index
    %c0_11 = arith.constant 0 : index
    %15 = vector.load %arg5[%c0_10, %c0_11] : memref<1x128xf32, #tpu.memory_space<vmem>>, vector<1x128xf32>
    %16 = vector.broadcast %15 : vector<1x128xf32> to vector<128x128xf32>
    %17 = arith.addf %14, %16 : vector<128x128xf32>
    %cst_12 = arith.constant 0.000000e+00 : f32
    %18 = vector.broadcast %cst_12 : f32 to vector<128x128xf32>
    %19 = arith.cmpf ogt, %17, %18 : vector<128x128xf32>
    %cst_13 = arith.constant 2.000000e-01 : f32
    %20 = vector.broadcast %cst_13 : f32 to vector<128x128xf32>
    %21 = arith.mulf %20, %17 : vector<128x128xf32>
    %22 = arith.select %19, %17, %21 : vector<128x128xi1>, vector<128x128xf32>
    %23 = arith.truncf %22 : vector<128x128xf32> to vector<128x128xbf16>
    %c0_14 = arith.constant 0 : index
    %c0_15 = arith.constant 0 : index
    %24 = vector.load %arg6[%c0_14, %c0_15] : memref<128x64xbf16, #tpu.memory_space<vmem>>, vector<128x64xbf16>
    %cst_16 = arith.constant dense<0.000000e+00> : vector<128x64xf32>
    %25 = tpu.matmul %23, %24, %cst_16 {dimension_numbers = #tpu.dot_dimension_numbers<[1], [0], [0], [1], [0, 0, 1, 1], [], []>} : vector<128x128xbf16>, vector<128x64xbf16>, vector<128x64xf32> -> vector<128x64xf32>
    %c0_17 = arith.constant 0 : index
    %c0_18 = arith.constant 0 : index
    %26 = vector.load %arg7[%c0_17, %c0_18] : memref<1x64xf32, #tpu.memory_space<vmem>>, vector<1x64xf32>
    %27 = vector.broadcast %26 : vector<1x64xf32> to vector<128x64xf32>
    %28 = arith.addf %25, %27 : vector<128x64xf32>
    %cst_19 = arith.constant 0.000000e+00 : f32
    %29 = vector.broadcast %cst_19 : f32 to vector<128x64xf32>
    %30 = arith.cmpf ogt, %28, %29 : vector<128x64xf32>
    %cst_20 = arith.constant 2.000000e-01 : f32
    %31 = vector.broadcast %cst_20 : f32 to vector<128x64xf32>
    %32 = arith.mulf %31, %28 : vector<128x64xf32>
    %33 = arith.select %30, %28, %32 : vector<128x64xi1>, vector<128x64xf32>
    %c0_21 = arith.constant 0 : index
    %c0_22 = arith.constant 0 : index
    %34 = vector.load %arg8[%c0_21, %c0_22] : memref<1x64xf32, #tpu.memory_space<vmem>>, vector<1x64xf32>
    %cst_23 = arith.constant dense<0.000000e+00> : vector<1x128xf32>
    %35 = tpu.matmul %34, %33, %cst_23 {dimension_numbers = #tpu.dot_dimension_numbers<[1], [1], [0], [0], [0, 0, 1, 0], [], []>} : vector<1x64xf32>, vector<128x64xf32>, vector<1x128xf32> -> vector<1x128xf32>
    %c0_24 = arith.constant 0 : index
    %c0_25 = arith.constant 0 : index
    %36 = vector.load %arg9[%c0_24, %c0_25] : memref<1x1xf32, #tpu.memory_space<vmem>>, vector<1x1xf32>
    %37 = vector.broadcast %36 : vector<1x1xf32> to vector<1x128xf32>
    %38 = arith.addf %35, %37 : vector<1x128xf32>
    %cst_26 = arith.constant 0.000000e+00 : f32
    %39 = vector.broadcast %cst_26 : f32 to vector<1x128xf32>
    %40 = arith.subf %39, %38 : vector<1x128xf32>
    %41 = math.exp %40 : vector<1x128xf32>
    %cst_27 = arith.constant 1.000000e+00 : f32
    %42 = vector.broadcast %cst_27 : f32 to vector<1x128xf32>
    %43 = arith.addf %42, %41 : vector<1x128xf32>
    %44 = tpu.reciprocal %43 : vector<1x128xf32> -> vector<1x128xf32>
    %c0_28 = arith.constant 0 : index
    %c0_29 = arith.constant 0 : index
    %45 = vector.load %arg10[%c0_28, %c0_29] : memref<1x128xf32, #tpu.memory_space<vmem>>, vector<1x128xf32>
    tpu.vector_store %arg10[%c0_28, %c0_29], %44 {strides = array<i32>} : memref<1x128xf32, #tpu.memory_space<vmem>>, vector<1x128xf32>,
    return
  }
  func.func @transform_0(%arg0: i32) -> (i32, i32) {
    %c0_i32 = arith.constant 0 : i32
    %c0_i32_0 = arith.constant 0 : i32
    return %arg0, %c0_i32 : i32, i32
  }
  func.func @transform_1(%arg0: i32) -> (i32, i32) {
    %c0_i32 = arith.constant 0 : i32
    %c0_i32_0 = arith.constant 0 : i32
    %c0_i32_1 = arith.constant 0 : i32
    return %c0_i32, %c0_i32_0 : i32, i32
  }
  func.func @transform_2(%arg0: i32) -> (i32, i32) {
    %c0_i32 = arith.constant 0 : i32
    %c0_i32_0 = arith.constant 0 : i32
    %c0_i32_1 = arith.constant 0 : i32
    return %c0_i32, %c0_i32_0 : i32, i32
  }
  func.func @transform_3(%arg0: i32) -> (i32, i32) {
    %c0_i32 = arith.constant 0 : i32
    %c0_i32_0 = arith.constant 0 : i32
    %c0_i32_1 = arith.constant 0 : i32
    return %c0_i32, %c0_i32_0 : i32, i32
  }
  func.func @transform_4(%arg0: i32) -> (i32, i32) {
    %c0_i32 = arith.constant 0 : i32
    %c0_i32_0 = arith.constant 0 : i32
    %c0_i32_1 = arith.constant 0 : i32
    return %c0_i32, %c0_i32_0 : i32, i32
  }
  func.func @transform_5(%arg0: i32) -> (i32, i32) {
    %c0_i32 = arith.constant 0 : i32
    %c0_i32_0 = arith.constant 0 : i32
    %c0_i32_1 = arith.constant 0 : i32
    return %c0_i32, %c0_i32_0 : i32, i32
  }
  func.func @transform_6(%arg0: i32) -> (i32, i32) {
    %c0_i32 = arith.constant 0 : i32
    %c0_i32_0 = arith.constant 0 : i32
    %c0_i32_1 = arith.constant 0 : i32
    return %c0_i32, %c0_i32_0 : i32, i32
  }
  func.func @transform_7(%arg0: i32) -> (i32, i32) {
    %c0_i32 = arith.constant 0 : i32
    %c0_i32_0 = arith.constant 0 : i32
    %c0_i32_1 = arith.constant 0 : i32
    return %c0_i32, %c0_i32_0 : i32, i32
  }
  func.func @transform_8(%arg0: i32) -> (i32, i32) {
    %c0_i32 = arith.constant 0 : i32
    %c0_i32_0 = arith.constant 0 : i32
    %c0_i32_1 = arith.constant 0 : i32
    return %c0_i32, %c0_i32_0 : i32, i32
  }
  func.func @transform_9(%arg0: i32) -> (i32, i32) {
    %c0_i32 = arith.constant 0 : i32
    %c0_i32_0 = arith.constant 0 : i32
    return %c0_i32, %arg0 : i32, i32
  }
}

</mosaic_0001>

<llo_original>
// kernel: discriminator_forward.1
$region0: #{discriminator_forward.1}
  #allocation0 [shape = 'u32[]', space=smem, size = 0x4, offset = 0x4, fixed_abs, tag = 'smem constant byte address 0x4 - core index']
  #allocation1 [shape = 'u32[144,128]{1,0:T(1,128)}', space=vmem, size = 0x12000, scoped, tag = 'internal scratch']
  #allocation2 [shape = 'f32[1,1]{1,0:T(1,128)S(1)}', space=vmem, size = 0x200, scoped, tag = 'scoped memory for discriminator_forward.1']
  %s0 = inlined_call_operand.vmem [shape: f32[8,256], index: 0, kind: input, shape index: {}]
  %s1 = inlined_call_operand.vmem [shape: bf16[256,256], index: 1, kind: input, shape index: {}]
  %s2 = inlined_call_operand.vmem [shape: f32[1,256], index: 2, kind: input, shape index: {}]
  %s3 = inlined_call_operand.vmem [shape: bf16[256,128], index: 3, kind: input, shape index: {}]
  %s4 = inlined_call_operand.vmem [shape: f32[1,128], index: 4, kind: input, shape index: {}]
  %s5 = inlined_call_operand.vmem [shape: bf16[128,64], index: 5, kind: input, shape index: {}]
  %s6 = inlined_call_operand.vmem [shape: f32[1,64], index: 6, kind: input, shape index: {}]
  %s7 = inlined_call_operand.vmem [shape: f32[1,64], index: 7, kind: input, shape index: {}]
  %s8 = inlined_call_operand.<no memory space> [shape: f32[1,1], index: 8, kind: input, shape index: {}]
  %s9 = inlined_call_operand.vmem [shape: f32[1,128], index: 9, kind: output, shape index: {}]
  %s10 = sld [smem:[#allocation0]]
  $region46: #{discriminator_forward.1} parent=0
    _
  %s12 = ssub.s32 1, %s10
  %s13 = scalar_select 0, %s12, %s10
  %v14 = vstv %s8
  %15 = vst [vmem:[#allocation2] sm:$0x1] %v14
  // Predicated region
  $region2: #{discriminator_forward.1} parent=0 // pred_check
    _
  $region3: #{discriminator_forward.1} parent=0 // pred_check_branch
    %17 = sbr.rel (0) target = $region5
  $region4: #{discriminator_forward.1} parent=0 // pred_region
    _
  $region5: #{discriminator_forward.1} parent=0 // pred_fallthru
    _
  // Predicated region
  $region6: #{discriminator_forward.1} parent=0 // pred_check
    _
  $region7: #{discriminator_forward.1} parent=0 // pred_check_branch
    %19 = sbr.rel (0) target = $region9
  $region8: #{discriminator_forward.1} parent=0 // pred_region
    _
  $region9: #{discriminator_forward.1} parent=0 // pred_fallthru
    _
  // Predicated region
  $region10: #{discriminator_forward.1} parent=0 // pred_check
    _
  $region11: #{discriminator_forward.1} parent=0 // pred_check_branch
    %21 = sbr.rel (0) target = $region13
  $region12: #{discriminator_forward.1} parent=0 // pred_region
    _
  $region13: #{discriminator_forward.1} parent=0 // pred_fallthru
    _
  // Predicated region
  $region14: #{discriminator_forward.1} parent=0 // pred_check
    _
  $region15: #{discriminator_forward.1} parent=0 // pred_check_branch
    %23 = sbr.rel (0) target = $region17
  $region16: #{discriminator_forward.1} parent=0 // pred_region
    _
  $region17: #{discriminator_forward.1} parent=0 // pred_fallthru
    _
  // Predicated region
  $region18: #{discriminator_forward.1} parent=0 // pred_check
    _
  $region19: #{discriminator_forward.1} parent=0 // pred_check_branch
    %25 = sbr.rel (0) target = $region21
  $region20: #{discriminator_forward.1} parent=0 // pred_region
    _
  $region21: #{discriminator_forward.1} parent=0 // pred_fallthru
    _
  // Predicated region
  $region22: #{discriminator_forward.1} parent=0 // pred_check
    _
  $region23: #{discriminator_forward.1} parent=0 // pred_check_branch
    %27 = sbr.rel (0) target = $region25
  $region24: #{discriminator_forward.1} parent=0 // pred_region
    _
  $region25: #{discriminator_forward.1} parent=0 // pred_fallthru
    _
  // Predicated region
  $region26: #{discriminator_forward.1} parent=0 // pred_check
    _
  $region27: #{discriminator_forward.1} parent=0 // pred_check_branch
    %29 = sbr.rel (0) target = $region29
  $region28: #{discriminator_forward.1} parent=0 // pred_region
    _
  $region29: #{discriminator_forward.1} parent=0 // pred_fallthru
    _
  // Predicated region
  $region30: #{discriminator_forward.1} parent=0 // pred_check
    _
  $region31: #{discriminator_forward.1} parent=0 // pred_check_branch
    %31 = sbr.rel (0) target = $region33
  $region32: #{discriminator_forward.1} parent=0 // pred_region
    _
  $region33: #{discriminator_forward.1} parent=0 // pred_fallthru
    _
  // Predicated region
  $region34: #{discriminator_forward.1} parent=0 // pred_check
    _
  $region35: #{discriminator_forward.1} parent=0 // pred_check_branch
    %33 = sbr.rel (0) target = $region37
  $region36: #{discriminator_forward.1} parent=0 // pred_region
    _
  $region37: #{discriminator_forward.1} parent=0 // pred_fallthru
    _
  %v35 = vld [vmem:[%s0] sm:$0xff]
  %v36 = vld [vmem:[%s0 + $0x8] sm:$0xff]
  %v37 = vld [vmem:[%s0 + $0x10] sm:$0xff]
  %v38 = vld [vmem:[%s0 + $0x18] sm:$0xff]
  %v39 = vld [vmem:[%s0 + $0x20] sm:$0xff]
  %v40 = vld [vmem:[%s0 + $0x28] sm:$0xff]
  %v41 = vld [vmem:[%s0 + $0x30] sm:$0xff]
  %v42 = vld [vmem:[%s0 + $0x38] sm:$0xff]
  %v43 = vld [vmem:[%s0 + $0x40] sm:$0xff]
  %v44 = vld [vmem:[%s0 + $0x48] sm:$0xff]
  %v45 = vld [vmem:[%s0 + $0x50] sm:$0xff]
  %v46 = vld [vmem:[%s0 + $0x58] sm:$0xff]
  %v47 = vld [vmem:[%s0 + $0x60] sm:$0xff]
  %v48 = vld [vmem:[%s0 + $0x68] sm:$0xff]
  %v49 = vld [vmem:[%s0 + $0x70] sm:$0xff]
  %v50 = vld [vmem:[%s0 + $0x78] sm:$0xff]
  %v51 = vld [vmem:[%s0 + $0x80] sm:$0xff]
  %v52 = vld [vmem:[%s0 + $0x88] sm:$0xff]
  %v53 = vld [vmem:[%s0 + $0x90] sm:$0xff]
  %v54 = vld [vmem:[%s0 + $0x98] sm:$0xff]
  %v55 = vld [vmem:[%s0 + $0xa0] sm:$0xff]
  %v56 = vld [vmem:[%s0 + $0xa8] sm:$0xff]
  %v57 = vld [vmem:[%s0 + $0xb0] sm:$0xff]
  %v58 = vld [vmem:[%s0 + $0xb8] sm:$0xff]
  %v59 = vld [vmem:[%s0 + $0xc0] sm:$0xff]
  %v60 = vld [vmem:[%s0 + $0xc8] sm:$0xff]
  %v61 = vld [vmem:[%s0 + $0xd0] sm:$0xff]
  %v62 = vld [vmem:[%s0 + $0xd8] sm:$0xff]
  %v63 = vld [vmem:[%s0 + $0xe0] sm:$0xff]
  %v64 = vld [vmem:[%s0 + $0xe8] sm:$0xff]
  %v65 = vld [vmem:[%s0 + $0xf0] sm:$0xff]
  %v66 = vld [vmem:[%s0 + $0xf8] sm:$0xff]
  %v67 = vpack.c.bf16 %v37, %v35
  %v68 = vpack.c.bf16 %v38, %v36
  %v69 = vpack.c.bf16 %v41, %v39
  %v70 = vpack.c.bf16 %v42, %v40
  %v71 = vpack.c.bf16 %v45, %v43
  %v72 = vpack.c.bf16 %v46, %v44
  %v73 = vpack.c.bf16 %v49, %v47
  %v74 = vpack.c.bf16 %v50, %v48
  %v75 = vpack.c.bf16 %v53, %v51
  %v76 = vpack.c.bf16 %v54, %v52
  %v77 = vpack.c.bf16 %v57, %v55
  %v78 = vpack.c.bf16 %v58, %v56
  %v79 = vpack.c.bf16 %v61, %v59
  %v80 = vpack.c.bf16 %v62, %v60
  %v81 = vpack.c.bf16 %v65, %v63
  %v82 = vpack.c.bf16 %v66, %v64
  %v83 = vld [vmem:[%s1] sm:$0xff]
  %v84 = vld [vmem:[%s1 + $0x8] sm:$0xff]
  %v85 = vld [vmem:[%s1 + $0x10] sm:$0xff]
  %v86 = vld [vmem:[%s1 + $0x18] sm:$0xff]
  %v87 = vld [vmem:[%s1 + $0x20] sm:$0xff]
  %v88 = vld [vmem:[%s1 + $0x28] sm:$0xff]
  %v89 = vld [vmem:[%s1 + $0x30] sm:$0xff]
  %v90 = vld [vmem:[%s1 + $0x38] sm:$0xff]
  %v91 = vld [vmem:[%s1 + $0x40] sm:$0xff]
  %v92 = vld [vmem:[%s1 + $0x48] sm:$0xff]
  %v93 = vld [vmem:[%s1 + $0x50] sm:$0xff]
  %v94 = vld [vmem:[%s1 + $0x58] sm:$0xff]
  %v95 = vld [vmem:[%s1 + $0x60] sm:$0xff]
  %v96 = vld [vmem:[%s1 + $0x68] sm:$0xff]
  %v97 = vld [vmem:[%s1 + $0x70] sm:$0xff]
  %v98 = vld [vmem:[%s1 + $0x78] sm:$0xff]
  %v99 = vld [vmem:[%s1 + $0x80] sm:$0xff]
  %v100 = vld [vmem:[%s1 + $0x88] sm:$0xff]
  %v101 = vld [vmem:[%s1 + $0x90] sm:$0xff]
  %v102 = vld [vmem:[%s1 + $0x98] sm:$0xff]
  %v103 = vld [vmem:[%s1 + $0xa0] sm:$0xff]
  %v104 = vld [vmem:[%s1 + $0xa8] sm:$0xff]
  %v105 = vld [vmem:[%s1 + $0xb0] sm:$0xff]
  %v106 = vld [vmem:[%s1 + $0xb8] sm:$0xff]
  %v107 = vld [vmem:[%s1 + $0xc0] sm:$0xff]
  %v108 = vld [vmem:[%s1 + $0xc8] sm:$0xff]
  %v109 = vld [vmem:[%s1 + $0xd0] sm:$0xff]
  %v110 = vld [vmem:[%s1 + $0xd8] sm:$0xff]
  %v111 = vld [vmem:[%s1 + $0xe0] sm:$0xff]
  %v112 = vld [vmem:[%s1 + $0xe8] sm:$0xff]
  %v113 = vld [vmem:[%s1 + $0xf0] sm:$0xff]
  %v114 = vld [vmem:[%s1 + $0xf8] sm:$0xff]
  %v115 = vld [vmem:[%s2] sm:$0x3]
  %v117 = vlaneseq
  %v118 = vshrl.u32 %v117, 7
  %v119 = vsub.s32 0, %v118
  %v120 = vrot.slane %v115, %v119
  %v121 = vlaneseq
  %v122 = vshrl.u32 %v121, 7
  %v123 = vsub.s32 1, %v122
  %v124 = vrot.slane %v115, %v123
  %v159 = vunpack.c.l.b16 %v83
  %v160 = vunpack.c.h.b16 %v83
  %v161 = vunpack.c.l.b16 %v84
  %v162 = vunpack.c.h.b16 %v84
  %v163 = vunpack.c.l.b16 %v85
  %v164 = vunpack.c.h.b16 %v85
  %v165 = vunpack.c.l.b16 %v86
  %v166 = vunpack.c.h.b16 %v86
  %v167 = vunpack.c.l.b16 %v87
  %v168 = vunpack.c.h.b16 %v87
  %v169 = vunpack.c.l.b16 %v88
  %v170 = vunpack.c.h.b16 %v88
  %v171 = vunpack.c.l.b16 %v89
  %v172 = vunpack.c.h.b16 %v89
  %v173 = vunpack.c.l.b16 %v90
  %v174 = vunpack.c.h.b16 %v90
  %v175 = vunpack.c.l.b16 %v91
  %v176 = vunpack.c.h.b16 %v91
  %v177 = vunpack.c.l.b16 %v92
  %v178 = vunpack.c.h.b16 %v92
  %v179 = vunpack.c.l.b16 %v93
  %v180 = vunpack.c.h.b16 %v93
  %v181 = vunpack.c.l.b16 %v94
  %v182 = vunpack.c.h.b16 %v94
  %v183 = vunpack.c.l.b16 %v95
  %v184 = vunpack.c.h.b16 %v95
  %v185 = vunpack.c.l.b16 %v96
  %v186 = vunpack.c.h.b16 %v96
  %v187 = vunpack.c.l.b16 %v97
  %v188 = vunpack.c.h.b16 %v97
  %v189 = vunpack.c.l.b16 %v98
  %v190 = vunpack.c.h.b16 %v98
  %v191 = vunpack.c.l.b16 %v99
  %v192 = vunpack.c.h.b16 %v99
  %v193 = vunpack.c.l.b16 %v100
  %v194 = vunpack.c.h.b16 %v100
  %v195 = vunpack.c.l.b16 %v101
  %v196 = vunpack.c.h.b16 %v101
  %v197 = vunpack.c.l.b16 %v102
  %v198 = vunpack.c.h.b16 %v102
  %v199 = vunpack.c.l.b16 %v103
  %v200 = vunpack.c.h.b16 %v103
  %v201 = vunpack.c.l.b16 %v104
  %v202 = vunpack.c.h.b16 %v104
  %v203 = vunpack.c.l.b16 %v105
  %v204 = vunpack.c.h.b16 %v105
  %v205 = vunpack.c.l.b16 %v106
  %v206 = vunpack.c.h.b16 %v106
  %v207 = vunpack.c.l.b16 %v107
  %v208 = vunpack.c.h.b16 %v107
  %v209 = vunpack.c.l.b16 %v108
  %v210 = vunpack.c.h.b16 %v108
  %v211 = vunpack.c.l.b16 %v109
  %v212 = vunpack.c.h.b16 %v109
  %v213 = vunpack.c.l.b16 %v110
  %v214 = vunpack.c.h.b16 %v110
  %v215 = vunpack.c.l.b16 %v111
  %v216 = vunpack.c.h.b16 %v111
  %v217 = vunpack.c.l.b16 %v112
  %v218 = vunpack.c.h.b16 %v112
  %v219 = vunpack.c.l.b16 %v113
  %v220 = vunpack.c.h.b16 %v113
  %v221 = vunpack.c.l.b16 %v114
  %v222 = vunpack.c.h.b16 %v114
  %v223 = vpack.c.b16 %v161, %v159
  %v224 = vpack.c.b16 %v162, %v160
  %v225 = vpack.c.b16 %v165, %v163
  %v226 = vpack.c.b16 %v166, %v164
  %v227 = vpack.c.b16 %v169, %v167
  %v228 = vpack.c.b16 %v170, %v168
  %v229 = vpack.c.b16 %v173, %v171
  %v230 = vpack.c.b16 %v174, %v172
  %v231 = vpack.c.b16 %v177, %v175
  %v232 = vpack.c.b16 %v178, %v176
  %v233 = vpack.c.b16 %v181, %v179
  %v234 = vpack.c.b16 %v182, %v180
  %v235 = vpack.c.b16 %v185, %v183
  %v236 = vpack.c.b16 %v186, %v184
  %v237 = vpack.c.b16 %v189, %v187
  %v238 = vpack.c.b16 %v190, %v188
  %v239 = vpack.c.b16 %v193, %v191
  %v240 = vpack.c.b16 %v194, %v192
  %v241 = vpack.c.b16 %v197, %v195
  %v242 = vpack.c.b16 %v198, %v196
  %v243 = vpack.c.b16 %v201, %v199
  %v244 = vpack.c.b16 %v202, %v200
  %v245 = vpack.c.b16 %v205, %v203
  %v246 = vpack.c.b16 %v206, %v204
  %v247 = vpack.c.b16 %v209, %v207
  %v248 = vpack.c.b16 %v210, %v208
  %v249 = vpack.c.b16 %v213, %v211
  %v250 = vpack.c.b16 %v214, %v212
  %v251 = vpack.c.b16 %v217, %v215
  %v252 = vpack.c.b16 %v218, %v216
  %v253 = vpack.c.b16 %v221, %v219
  %v254 = vpack.c.b16 %v222, %v220
  %287 = vmatprep.subr.bf16.mxu0 %v224
  %288 = vmatpush1.bf16.msra.mxu0 %v223
  %289 = vmatprep.subr.bf16.mxu0 %v226
  %290 = vmatpush1.bf16.msra.mxu0 %v225
  %291 = vmatprep.subr.bf16.mxu0 %v228
  %292 = vmatpush1.bf16.msra.mxu0 %v227
  %293 = vmatprep.subr.bf16.mxu0 %v230
  %294 = vmatpush1.bf16.msra.mxu0 %v229
  %295 = vmatprep.subr.bf16.mxu0 %v232
  %296 = vmatpush1.bf16.msra.mxu0 %v231
  %297 = vmatprep.subr.bf16.mxu0 %v234
  %298 = vmatpush1.bf16.msra.mxu0 %v233
  %299 = vmatprep.subr.bf16.mxu0 %v236
  %300 = vmatpush1.bf16.msra.mxu0 %v235
  %301 = vmatprep.subr.bf16.mxu0 %v238
  %302 = vmatpush1.bf16.msra.mxu0 %v237
  %303 = vmatprep.subr.bf16.mxu0 %v240
  %304 = vmatpush1.bf16.msra.mxu0 %v239
  %305 = vmatprep.subr.bf16.mxu0 %v242
  %306 = vmatpush1.bf16.msra.mxu0 %v241
  %307 = vmatprep.subr.bf16.mxu0 %v244
  %308 = vmatpush1.bf16.msra.mxu0 %v243
  %309 = vmatprep.subr.bf16.mxu0 %v246
  %310 = vmatpush1.bf16.msra.mxu0 %v245
  %311 = vmatprep.subr.bf16.mxu0 %v248
  %312 = vmatpush1.bf16.msra.mxu0 %v247
  %313 = vmatprep.subr.bf16.mxu0 %v250
  %314 = vmatpush1.bf16.msra.mxu0 %v249
  %315 = vmatprep.subr.bf16.mxu0 %v252
  %316 = vmatpush1.bf16.msra.mxu0 %v251
  %317 = vmatprep.subr.bf16.mxu0 %v254
  %318 = vmatpush1.bf16.msra.mxu0 %v253
  %319 = vmatprep.mubr.bf16.mxu0 %v68
  %320 = vmatmul.mubr.bf16.gmra.mrb[0].mxu0 %v67
  %v321 = vpop.f32.mrb[0].mxu0
  %v322 = vadd.f32 %v120, %v321
  %v323 = vpop.f32.mrb[0].mxu0
  %v324 = vadd.f32 %v124, %v323
  %v325 = vpop.f32.mrb[0].mxu0
  %v326 = vadd.f32 %v120, %v325
  %v327 = vpop.f32.mrb[0].mxu0
  %v328 = vadd.f32 %v124, %v327
  %329 = vmatprep.mubr.bf16.mxu0 %v70
  %330 = vmatmul.mubr.bf16.gmra.mrb[0].mxu0 %v69
  %v331 = vpop.f32.mrb[0].mxu0
  %v332 = vadd.f32 %v120, %v331
  %v333 = vpop.f32.mrb[0].mxu0
  %v334 = vadd.f32 %v124, %v333
  %v335 = vpop.f32.mrb[0].mxu0
  %v336 = vadd.f32 %v120, %v335
  %v337 = vpop.f32.mrb[0].mxu0
  %v338 = vadd.f32 %v124, %v337
  %339 = vmatprep.mubr.bf16.mxu0 %v72
  %340 = vmatmul.mubr.bf16.gmra.mrb[0].mxu0 %v71
  %v341 = vpop.f32.mrb[0].mxu0
  %v342 = vadd.f32 %v120, %v341
  %v343 = vpop.f32.mrb[0].mxu0
  %v344 = vadd.f32 %v124, %v343
  %v345 = vpop.f32.mrb[0].mxu0
  %v346 = vadd.f32 %v120, %v345
  %v347 = vpop.f32.mrb[0].mxu0
  %v348 = vadd.f32 %v124, %v347
  %349 = vmatprep.mubr.bf16.mxu0 %v74
  %350 = vmatmul.mubr.bf16.gmra.mrb[0].mxu0 %v73
  %v351 = vpop.f32.mrb[0].mxu0
  %v352 = vadd.f32 %v120, %v351
  %v353 = vpop.f32.mrb[0].mxu0
  %v354 = vadd.f32 %v124, %v353
  %v355 = vpop.f32.mrb[0].mxu0
  %v356 = vadd.f32 %v120, %v355
  %v357 = vpop.f32.mrb[0].mxu0
  %v358 = vadd.f32 %v124, %v357
  %359 = vmatprep.mubr.bf16.mxu0 %v76
  %360 = vmatmul.mubr.bf16.gmra.mrb[0].mxu0 %v75
  %v361 = vpop.f32.mrb[0].mxu0
  %v362 = vadd.f32 %v120, %v361
  %v363 = vpop.f32.mrb[0].mxu0
  %v364 = vadd.f32 %v124, %v363
  %v365 = vpop.f32.mrb[0].mxu0
  %v366 = vadd.f32 %v120, %v365
  %v367 = vpop.f32.mrb[0].mxu0
  %v368 = vadd.f32 %v124, %v367
  %369 = vmatprep.mubr.bf16.mxu0 %v78
  %370 = vmatmul.mubr.bf16.gmra.mrb[0].mxu0 %v77
  %v371 = vpop.f32.mrb[0].mxu0
  %v372 = vadd.f32 %v120, %v371
  %v373 = vpop.f32.mrb[0].mxu0
  %v374 = vadd.f32 %v124, %v373
  %v375 = vpop.f32.mrb[0].mxu0
  %v376 = vadd.f32 %v120, %v375
  %v377 = vpop.f32.mrb[0].mxu0
  %v378 = vadd.f32 %v124, %v377
  %379 = vmatprep.mubr.bf16.mxu0 %v80
  %380 = vmatmul.mubr.bf16.gmra.mrb[0].mxu0 %v79
  %v381 = vpop.f32.mrb[0].mxu0
  %v382 = vadd.f32 %v120, %v381
  %v383 = vpop.f32.mrb[0].mxu0
  %v384 = vadd.f32 %v124, %v383
  %v385 = vpop.f32.mrb[0].mxu0
  %v386 = vadd.f32 %v120, %v385
  %v387 = vpop.f32.mrb[0].mxu0
  %v388 = vadd.f32 %v124, %v387
  %389 = vmatprep.mubr.bf16.mxu0 %v82
  %390 = vmatmul.mubr.bf16.gmra.mrb[0].mxu0 %v81
  %v391 = vpop.f32.mrb[0].mxu0
  %v392 = vadd.f32 %v120, %v391
  %v393 = vpop.f32.mrb[0].mxu0
  %v394 = vadd.f32 %v124, %v393
  %v395 = vpop.f32.mrb[0].mxu0
  %v396 = vadd.f32 %v120, %v395
  %v397 = vpop.f32.mrb[0].mxu0
  %v398 = vadd.f32 %v124, %v397
  %399 = vdwg.mxu0
  %vm400 = vcmp.gt.f32.partialorder %v322, 0.0
  %vm401 = vcmp.gt.f32.partialorder %v324, 0.0
  %vm402 = vcmp.gt.f32.partialorder %v326, 0.0
  %vm403 = vcmp.gt.f32.partialorder %v328, 0.0
  %vm404 = vcmp.gt.f32.partialorder %v332, 0.0
  %vm405 = vcmp.gt.f32.partialorder %v334, 0.0
  %vm406 = vcmp.gt.f32.partialorder %v336, 0.0
  %vm407 = vcmp.gt.f32.partialorder %v338, 0.0
  %vm408 = vcmp.gt.f32.partialorder %v342, 0.0
  %vm409 = vcmp.gt.f32.partialorder %v344, 0.0
  %vm410 = vcmp.gt.f32.partialorder %v346, 0.0
  %vm411 = vcmp.gt.f32.partialorder %v348, 0.0
  %vm412 = vcmp.gt.f32.partialorder %v352, 0.0
  %vm413 = vcmp.gt.f32.partialorder %v354, 0.0
  %vm414 = vcmp.gt.f32.partialorder %v356, 0.0
  %vm415 = vcmp.gt.f32.partialorder %v358, 0.0
  %vm416 = vcmp.gt.f32.partialorder %v362, 0.0
  %vm417 = vcmp.gt.f32.partialorder %v364, 0.0
  %vm418 = vcmp.gt.f32.partialorder %v366, 0.0
  %vm419 = vcmp.gt.f32.partialorder %v368, 0.0
  %vm420 = vcmp.gt.f32.partialorder %v372, 0.0
  %vm421 = vcmp.gt.f32.partialorder %v374, 0.0
  %vm422 = vcmp.gt.f32.partialorder %v376, 0.0
  %vm423 = vcmp.gt.f32.partialorder %v378, 0.0
  %vm424 = vcmp.gt.f32.partialorder %v382, 0.0
  %vm425 = vcmp.gt.f32.partialorder %v384, 0.0
  %vm426 = vcmp.gt.f32.partialorder %v386, 0.0
  %vm427 = vcmp.gt.f32.partialorder %v388, 0.0
  %vm428 = vcmp.gt.f32.partialorder %v392, 0.0
  %vm429 = vcmp.gt.f32.partialorder %v394, 0.0
  %vm430 = vcmp.gt.f32.partialorder %v396, 0.0
  %vm431 = vcmp.gt.f32.partialorder %v398, 0.0
  %v432 = vmul.f32 %v322, 0.2
  %v433 = vmul.f32 %v324, 0.2
  %v434 = vmul.f32 %v326, 0.2
  %v435 = vmul.f32 %v328, 0.2
  %v436 = vmul.f32 %v332, 0.2
  %v437 = vmul.f32 %v334, 0.2
  %v438 = vmul.f32 %v336, 0.2
  %v439 = vmul.f32 %v338, 0.2
  %v440 = vmul.f32 %v342, 0.2
  %v441 = vmul.f32 %v344, 0.2
  %v442 = vmul.f32 %v346, 0.2
  %v443 = vmul.f32 %v348, 0.2
  %v444 = vmul.f32 %v352, 0.2
  %v445 = vmul.f32 %v354, 0.2
  %v446 = vmul.f32 %v356, 0.2
  %v447 = vmul.f32 %v358, 0.2
  %v448 = vmul.f32 %v362, 0.2
  %v449 = vmul.f32 %v364, 0.2
  %v450 = vmul.f32 %v366, 0.2
  %v451 = vmul.f32 %v368, 0.2
  %v452 = vmul.f32 %v372, 0.2
  %v453 = vmul.f32 %v374, 0.2
  %v454 = vmul.f32 %v376, 0.2
  %v455 = vmul.f32 %v378, 0.2
  %v456 = vmul.f32 %v382, 0.2
  %v457 = vmul.f32 %v384, 0.2
  %v458 = vmul.f32 %v386, 0.2
  %v459 = vmul.f32 %v388, 0.2
  %v460 = vmul.f32 %v392, 0.2
  %v461 = vmul.f32 %v394, 0.2
  %v462 = vmul.f32 %v396, 0.2
  %v463 = vmul.f32 %v398, 0.2
  %v464 = vsel %vm400, %v322, %v432
  %v465 = vsel %vm401, %v324, %v433
  %v466 = vsel %vm402, %v326, %v434
  %v467 = vsel %vm403, %v328, %v435
  %v468 = vsel %vm404, %v332, %v436
  %v469 = vsel %vm405, %v334, %v437
  %v470 = vsel %vm406, %v336, %v438
  %v471 = vsel %vm407, %v338, %v439
  %v472 = vsel %vm408, %v342, %v440
  %v473 = vsel %vm409, %v344, %v441
  %v474 = vsel %vm410, %v346, %v442
  %v475 = vsel %vm411, %v348, %v443
  %v476 = vsel %vm412, %v352, %v444
  %v477 = vsel %vm413, %v354, %v445
  %v478 = vsel %vm414, %v356, %v446
  %v479 = vsel %vm415, %v358, %v447
  %v480 = vsel %vm416, %v362, %v448
  %v481 = vsel %vm417, %v364, %v449
  %v482 = vsel %vm418, %v366, %v450
  %v483 = vsel %vm419, %v368, %v451
  %v484 = vsel %vm420, %v372, %v452
  %v485 = vsel %vm421, %v374, %v453
  %v486 = vsel %vm422, %v376, %v454
  %v487 = vsel %vm423, %v378, %v455
  %v488 = vsel %vm424, %v382, %v456
  %v489 = vsel %vm425, %v384, %v457
  %v490 = vsel %vm426, %v386, %v458
  %v491 = vsel %vm427, %v388, %v459
  %v492 = vsel %vm428, %v392, %v460
  %v493 = vsel %vm429, %v394, %v461
  %v494 = vsel %vm430, %v396, %v462
  %v495 = vsel %vm431, %v398, %v463
  %v496 = vpack.c.bf16 %v466, %v464
  %v497 = vpack.c.bf16 %v467, %v465
  %v498 = vpack.c.bf16 %v470, %v468
  %v499 = vpack.c.bf16 %v471, %v469
  %v500 = vpack.c.bf16 %v474, %v472
  %v501 = vpack.c.bf16 %v475, %v473
  %v502 = vpack.c.bf16 %v478, %v476
  %v503 = vpack.c.bf16 %v479, %v477
  %v504 = vpack.c.bf16 %v482, %v480
  %v505 = vpack.c.bf16 %v483, %v481
  %v506 = vpack.c.bf16 %v486, %v484
  %v507 = vpack.c.bf16 %v487, %v485
  %v508 = vpack.c.bf16 %v490, %v488
  %v509 = vpack.c.bf16 %v491, %v489
  %v510 = vpack.c.bf16 %v494, %v492
  %v511 = vpack.c.bf16 %v495, %v493
  %v512 = vld [vmem:[%s3] sm:$0xf]
  %v513 = vld [vmem:[%s3 + $0x4] sm:$0xf]
  %v514 = vld [vmem:[%s3 + $0x8] sm:$0xf]
  %v515 = vld [vmem:[%s3 + $0xc] sm:$0xf]
  %v516 = vld [vmem:[%s3 + $0x10] sm:$0xf]
  %v517 = vld [vmem:[%s3 + $0x14] sm:$0xf]
  %v518 = vld [vmem:[%s3 + $0x18] sm:$0xf]
  %v519 = vld [vmem:[%s3 + $0x1c] sm:$0xf]
  %v520 = vld [vmem:[%s3 + $0x20] sm:$0xf]
  %v521 = vld [vmem:[%s3 + $0x24] sm:$0xf]
  %v522 = vld [vmem:[%s3 + $0x28] sm:$0xf]
  %v523 = vld [vmem:[%s3 + $0x2c] sm:$0xf]
  %v524 = vld [vmem:[%s3 + $0x30] sm:$0xf]
  %v525 = vld [vmem:[%s3 + $0x34] sm:$0xf]
  %v526 = vld [vmem:[%s3 + $0x38] sm:$0xf]
  %v527 = vld [vmem:[%s3 + $0x3c] sm:$0xf]
  %v528 = vld [vmem:[%s3 + $0x40] sm:$0xf]
  %v529 = vld [vmem:[%s3 + $0x44] sm:$0xf]
  %v530 = vld [vmem:[%s3 + $0x48] sm:$0xf]
  %v531 = vld [vmem:[%s3 + $0x4c] sm:$0xf]
  %v532 = vld [vmem:[%s3 + $0x50] sm:$0xf]
  %v533 = vld [vmem:[%s3 + $0x54] sm:$0xf]
  %v534 = vld [vmem:[%s3 + $0x58] sm:$0xf]
  %v535 = vld [vmem:[%s3 + $0x5c] sm:$0xf]
  %v536 = vld [vmem:[%s3 + $0x60] sm:$0xf]
  %v537 = vld [vmem:[%s3 + $0x64] sm:$0xf]
  %v538 = vld [vmem:[%s3 + $0x68] sm:$0xf]
  %v539 = vld [vmem:[%s3 + $0x6c] sm:$0xf]
  %v540 = vld [vmem:[%s3 + $0x70] sm:$0xf]
  %v541 = vld [vmem:[%s3 + $0x74] sm:$0xf]
  %v542 = vld [vmem:[%s3 + $0x78] sm:$0xf]
  %v543 = vld [vmem:[%s3 + $0x7c] sm:$0xf]
  %v544 = vld [vmem:[%s4] sm:$0x1]
  %v546 = vlaneseq
  %v547 = vshrl.u32 %v546, 7
  %v548 = vsub.s32 0, %v547
  %v549 = vrot.slane %v544, %v548
  %v583 = vunpack.c.l.b16 %v512
  %v584 = vunpack.c.l.b16 %v513
  %v585 = vunpack.c.l.b16 %v514
  %v586 = vunpack.c.l.b16 %v515
  %v587 = vunpack.c.l.b16 %v516
  %v588 = vunpack.c.l.b16 %v517
  %v589 = vunpack.c.l.b16 %v518
  %v590 = vunpack.c.l.b16 %v519
  %v591 = vunpack.c.l.b16 %v520
  %v592 = vunpack.c.l.b16 %v521
  %v593 = vunpack.c.l.b16 %v522
  %v594 = vunpack.c.l.b16 %v523
  %v595 = vunpack.c.l.b16 %v524
  %v596 = vunpack.c.l.b16 %v525
  %v597 = vunpack.c.l.b16 %v526
  %v598 = vunpack.c.l.b16 %v527
  %v599 = vunpack.c.l.b16 %v528
  %v600 = vunpack.c.l.b16 %v529
  %v601 = vunpack.c.l.b16 %v530
  %v602 = vunpack.c.l.b16 %v531
  %v603 = vunpack.c.l.b16 %v532
  %v604 = vunpack.c.l.b16 %v533
  %v605 = vunpack.c.l.b16 %v534
  %v606 = vunpack.c.l.b16 %v535
  %v607 = vunpack.c.l.b16 %v536
  %v608 = vunpack.c.l.b16 %v537
  %v609 = vunpack.c.l.b16 %v538
  %v610 = vunpack.c.l.b16 %v539
  %v611 = vunpack.c.l.b16 %v540
  %v612 = vunpack.c.l.b16 %v541
  %v613 = vunpack.c.l.b16 %v542
  %v614 = vunpack.c.l.b16 %v543
  %v615 = vpack.c.b16 %v584, %v583
  %v616 = vpack.c.b16 %v586, %v585
  %v617 = vpack.c.b16 %v588, %v587
  %v618 = vpack.c.b16 %v590, %v589
  %v619 = vpack.c.b16 %v592, %v591
  %v620 = vpack.c.b16 %v594, %v593
  %v621 = vpack.c.b16 %v596, %v595
  %v622 = vpack.c.b16 %v598, %v597
  %v623 = vpack.c.b16 %v600, %v599
  %v624 = vpack.c.b16 %v602, %v601
  %v625 = vpack.c.b16 %v604, %v603
  %v626 = vpack.c.b16 %v606, %v605
  %v627 = vpack.c.b16 %v608, %v607
  %v628 = vpack.c.b16 %v610, %v609
  %v629 = vpack.c.b16 %v612, %v611
  %v630 = vpack.c.b16 %v614, %v613
  %647 = vmatprep.subr.bf16.mxu0 0
  %648 = vmatpush1.bf16.msra.mxu0 %v615
  %649 = vmatprep.subr.bf16.mxu0 0
  %650 = vmatpush1.bf16.msra.mxu0 %v616
  %651 = vmatprep.subr.bf16.mxu0 0
  %652 = vmatpush1.bf16.msra.mxu0 %v617
  %653 = vmatprep.subr.bf16.mxu0 0
  %654 = vmatpush1.bf16.msra.mxu0 %v618
  %655 = vmatprep.subr.bf16.mxu0 0
  %656 = vmatpush1.bf16.msra.mxu0 %v619
  %657 = vmatprep.subr.bf16.mxu0 0
  %658 = vmatpush1.bf16.msra.mxu0 %v620
  %659 = vmatprep.subr.bf16.mxu0 0
  %660 = vmatpush1.bf16.msra.mxu0 %v621
  %661 = vmatprep.subr.bf16.mxu0 0
  %662 = vmatpush1.bf16.msra.mxu0 %v622
  %663 = vmatprep.subr.bf16.mxu0 0
  %664 = vmatpush1.bf16.msra.mxu0 %v623
  %665 = vmatprep.subr.bf16.mxu0 0
  %666 = vmatpush1.bf16.msra.mxu0 %v624
  %667 = vmatprep.subr.bf16.mxu0 0
  %668 = vmatpush1.bf16.msra.mxu0 %v625
  %669 = vmatprep.subr.bf16.mxu0 0
  %670 = vmatpush1.bf16.msra.mxu0 %v626
  %671 = vmatprep.subr.bf16.mxu0 0
  %672 = vmatpush1.bf16.msra.mxu0 %v627
  %673 = vmatprep.subr.bf16.mxu0 0
  %674 = vmatpush1.bf16.msra.mxu0 %v628
  %675 = vmatprep.subr.bf16.mxu0 0
  %676 = vmatpush1.bf16.msra.mxu0 %v629
  %677 = vmatprep.subr.bf16.mxu0 0
  %678 = vmatpush1.bf16.msra.mxu0 %v630
  %679 = vmatprep.mubr.bf16.mxu0 %v497
  %680 = vmatmul.mubr.bf16.gmra.mrb[0].mxu0 %v496
  %v681 = vpop.f32.mrb[0].mxu0
  %v682 = vadd.f32 %v549, %v681
  %v683 = vpop.f32.mrb[0].mxu0
  %v684 = vpop.f32.mrb[0].mxu0
  %v685 = vadd.f32 %v549, %v684
  %v686 = vpop.f32.mrb[0].mxu0
  %687 = vmatprep.mubr.bf16.mxu0 %v499
  %688 = vmatmul.mubr.bf16.gmra.mrb[0].mxu0 %v498
  %v689 = vpop.f32.mrb[0].mxu0
  %v690 = vadd.f32 %v549, %v689
  %v691 = vpop.f32.mrb[0].mxu0
  %v692 = vpop.f32.mrb[0].mxu0
  %v693 = vadd.f32 %v549, %v692
  %v694 = vpop.f32.mrb[0].mxu0
  %695 = vmatprep.mubr.bf16.mxu0 %v501
  %696 = vmatmul.mubr.bf16.gmra.mrb[0].mxu0 %v500
  %v697 = vpop.f32.mrb[0].mxu0
  %v698 = vadd.f32 %v549, %v697
  %v699 = vpop.f32.mrb[0].mxu0
  %v700 = vpop.f32.mrb[0].mxu0
  %v701 = vadd.f32 %v549, %v700
  %v702 = vpop.f32.mrb[0].mxu0
  %703 = vmatprep.mubr.bf16.mxu0 %v503
  %704 = vmatmul.mubr.bf16.gmra.mrb[0].mxu0 %v502
  %v705 = vpop.f32.mrb[0].mxu0
  %v706 = vadd.f32 %v549, %v705
  %v707 = vpop.f32.mrb[0].mxu0
  %v708 = vpop.f32.mrb[0].mxu0
  %v709 = vadd.f32 %v549, %v708
  %v710 = vpop.f32.mrb[0].mxu0
  %711 = vmatprep.mubr.bf16.mxu0 %v505
  %712 = vmatmul.mubr.bf16.gmra.mrb[0].mxu0 %v504
  %v713 = vpop.f32.mrb[0].mxu0
  %v714 = vadd.f32 %v549, %v713
  %v715 = vpop.f32.mrb[0].mxu0
  %v716 = vpop.f32.mrb[0].mxu0
  %v717 = vadd.f32 %v549, %v716
  %v718 = vpop.f32.mrb[0].mxu0
  %719 = vmatprep.mubr.bf16.mxu0 %v507
  %720 = vmatmul.mubr.bf16.gmra.mrb[0].mxu0 %v506
  %v721 = vpop.f32.mrb[0].mxu0
  %v722 = vadd.f32 %v549, %v721
  %v723 = vpop.f32.mrb[0].mxu0
  %v724 = vpop.f32.mrb[0].mxu0
  %v725 = vadd.f32 %v549, %v724
  %v726 = vpop.f32.mrb[0].mxu0
  %727 = vmatprep.mubr.bf16.mxu0 %v509
  %728 = vmatmul.mubr.bf16.gmra.mrb[0].mxu0 %v508
  %v729 = vpop.f32.mrb[0].mxu0
  %v730 = vadd.f32 %v549, %v729
  %v731 = vpop.f32.mrb[0].mxu0
  %v732 = vpop.f32.mrb[0].mxu0
  %v733 = vadd.f32 %v549, %v732
  %v734 = vpop.f32.mrb[0].mxu0
  %735 = vmatprep.mubr.bf16.mxu0 %v511
  %736 = vmatmul.mubr.bf16.gmra.mrb[0].mxu0 %v510
  %v737 = vpop.f32.mrb[0].mxu0
  %v738 = vadd.f32 %v549, %v737
  %v739 = vpop.f32.mrb[0].mxu0
  %v740 = vpop.f32.mrb[0].mxu0
  %v741 = vadd.f32 %v549, %v740
  %v742 = vpop.f32.mrb[0].mxu0
  %743 = vdwg.mxu0
  %vm744 = vcmp.gt.f32.partialorder %v682, 0.0
  %vm745 = vcmp.gt.f32.partialorder %v685, 0.0
  %vm746 = vcmp.gt.f32.partialorder %v690, 0.0
  %vm747 = vcmp.gt.f32.partialorder %v693, 0.0
  %vm748 = vcmp.gt.f32.partialorder %v698, 0.0
  %vm749 = vcmp.gt.f32.partialorder %v701, 0.0
  %vm750 = vcmp.gt.f32.partialorder %v706, 0.0
  %vm751 = vcmp.gt.f32.partialorder %v709, 0.0
  %vm752 = vcmp.gt.f32.partialorder %v714, 0.0
  %vm753 = vcmp.gt.f32.partialorder %v717, 0.0
  %vm754 = vcmp.gt.f32.partialorder %v722, 0.0
  %vm755 = vcmp.gt.f32.partialorder %v725, 0.0
  %vm756 = vcmp.gt.f32.partialorder %v730, 0.0
  %vm757 = vcmp.gt.f32.partialorder %v733, 0.0
  %vm758 = vcmp.gt.f32.partialorder %v738, 0.0
  %vm759 = vcmp.gt.f32.partialorder %v741, 0.0
  %v760 = vmul.f32 %v682, 0.2
  %v761 = vmul.f32 %v685, 0.2
  %v762 = vmul.f32 %v690, 0.2
  %v763 = vmul.f32 %v693, 0.2
  %v764 = vmul.f32 %v698, 0.2
  %v765 = vmul.f32 %v701, 0.2
  %v766 = vmul.f32 %v706, 0.2
  %v767 = vmul.f32 %v709, 0.2
  %v768 = vmul.f32 %v714, 0.2
  %v769 = vmul.f32 %v717, 0.2
  %v770 = vmul.f32 %v722, 0.2
  %v771 = vmul.f32 %v725, 0.2
  %v772 = vmul.f32 %v730, 0.2
  %v773 = vmul.f32 %v733, 0.2
  %v774 = vmul.f32 %v738, 0.2
  %v775 = vmul.f32 %v741, 0.2
  %v776 = vsel %vm744, %v682, %v760
  %v777 = vsel %vm745, %v685, %v761
  %v778 = vsel %vm746, %v690, %v762
  %v779 = vsel %vm747, %v693, %v763
  %v780 = vsel %vm748, %v698, %v764
  %v781 = vsel %vm749, %v701, %v765
  %v782 = vsel %vm750, %v706, %v766
  %v783 = vsel %vm751, %v709, %v767
  %v784 = vsel %vm752, %v714, %v768
  %v785 = vsel %vm753, %v717, %v769
  %v786 = vsel %vm754, %v722, %v770
  %v787 = vsel %vm755, %v725, %v771
  %v788 = vsel %vm756, %v730, %v772
  %v789 = vsel %vm757, %v733, %v773
  %v790 = vsel %vm758, %v738, %v774
  %v791 = vsel %vm759, %v741, %v775
  %v792 = vpack.c.bf16 %v777, %v776
  %v793 = vpack.c.bf16 %v779, %v778
  %v794 = vpack.c.bf16 %v781, %v780
  %v795 = vpack.c.bf16 %v783, %v782
  %v796 = vpack.c.bf16 %v785, %v784
  %v797 = vpack.c.bf16 %v787, %v786
  %v798 = vpack.c.bf16 %v789, %v788
  %v799 = vpack.c.bf16 %v791, %v790
  %v800 = vld [vmem:[%s5] sm:$0xf]
  %v801 = vld [vmem:[%s5 + $0x4] sm:$0xf]
  %v802 = vld [vmem:[%s5 + $0x8] sm:$0xf]
  %v803 = vld [vmem:[%s5 + $0xc] sm:$0xf]
  %v804 = vld [vmem:[%s5 + $0x10] sm:$0xf]
  %v805 = vld [vmem:[%s5 + $0x14] sm:$0xf]
  %v806 = vld [vmem:[%s5 + $0x18] sm:$0xf]
  %v807 = vld [vmem:[%s5 + $0x1c] sm:$0xf]
  %v808 = vld [vmem:[%s5 + $0x20] sm:$0xf]
  %v809 = vld [vmem:[%s5 + $0x24] sm:$0xf]
  %v810 = vld [vmem:[%s5 + $0x28] sm:$0xf]
  %v811 = vld [vmem:[%s5 + $0x2c] sm:$0xf]
  %v812 = vld [vmem:[%s5 + $0x30] sm:$0xf]
  %v813 = vld [vmem:[%s5 + $0x34] sm:$0xf]
  %v814 = vld [vmem:[%s5 + $0x38] sm:$0xf]
  %v815 = vld [vmem:[%s5 + $0x3c] sm:$0xf]
  %v816 = vld [vmem:[%s6] sm:$0x1]
  %v818 = vlaneseq
  %v819 = vshrl.u32 %v818, 7
  %v820 = vsub.s32 0, %v819
  %v821 = vrot.slane %v816, %v820
  %v839 = vunpack.c.l.b16 %v800
  %v840 = vunpack.c.l.b16 %v801
  %v841 = vunpack.c.l.b16 %v802
  %v842 = vunpack.c.l.b16 %v803
  %v843 = vunpack.c.l.b16 %v804
  %v844 = vunpack.c.l.b16 %v805
  %v845 = vunpack.c.l.b16 %v806
  %v846 = vunpack.c.l.b16 %v807
  %v847 = vunpack.c.l.b16 %v808
  %v848 = vunpack.c.l.b16 %v809
  %v849 = vunpack.c.l.b16 %v810
  %v850 = vunpack.c.l.b16 %v811
  %v851 = vunpack.c.l.b16 %v812
  %v852 = vunpack.c.l.b16 %v813
  %v853 = vunpack.c.l.b16 %v814
  %v854 = vunpack.c.l.b16 %v815
  %v855 = vpack.c.b16 %v840, %v839
  %v856 = vpack.c.b16 %v842, %v841
  %v857 = vpack.c.b16 %v844, %v843
  %v858 = vpack.c.b16 %v846, %v845
  %v859 = vpack.c.b16 %v848, %v847
  %v860 = vpack.c.b16 %v850, %v849
  %v861 = vpack.c.b16 %v852, %v851
  %v862 = vpack.c.b16 %v854, %v853
  %871 = vmatprep.subr.bf16.mxu0 0
  %872 = vmatpush1.bf16.msra.mxu0 %v855
  %873 = vmatprep.subr.bf16.mxu0 0
  %874 = vmatpush1.bf16.msra.mxu0 %v856
  %875 = vmatprep.subr.bf16.mxu0 0
  %876 = vmatpush1.bf16.msra.mxu0 %v857
  %877 = vmatprep.subr.bf16.mxu0 0
  %878 = vmatpush1.bf16.msra.mxu0 %v858
  %879 = vmatprep.subr.bf16.mxu0 0
  %880 = vmatpush1.bf16.msra.mxu0 %v859
  %881 = vmatprep.subr.bf16.mxu0 0
  %882 = vmatpush1.bf16.msra.mxu0 %v860
  %883 = vmatprep.subr.bf16.mxu0 0
  %884 = vmatpush1.bf16.msra.mxu0 %v861
  %885 = vmatprep.subr.bf16.mxu0 0
  %886 = vmatpush1.bf16.msra.mxu0 %v862
  %887 = vmatprep.subr.bf16.mxu0 0
  %888 = vmatpush1.bf16.msra.mxu0 0
  %889 = vmatprep.subr.bf16.mxu0 0
  %890 = vmatpush1.bf16.msra.mxu0 0
  %891 = vmatprep.subr.bf16.mxu0 0
  %892 = vmatpush1.bf16.msra.mxu0 0
  %893 = vmatprep.subr.bf16.mxu0 0
  %894 = vmatpush1.bf16.msra.mxu0 0
  %895 = vmatprep.subr.bf16.mxu0 0
  %896 = vmatpush1.bf16.msra.mxu0 0
  %897 = vmatprep.subr.bf16.mxu0 0
  %898 = vmatpush1.bf16.msra.mxu0 0
  %899 = vmatprep.subr.bf16.mxu0 0
  %900 = vmatpush1.bf16.msra.mxu0 0
  %901 = vmatprep.subr.bf16.mxu0 0
  %902 = vmatpush1.bf16.msra.mxu0 0
  %903 = vmatprep.mubr.bf16.mxu0 0
  %904 = vmatmul.mubr.bf16.gmra.mrb[0].mxu0 %v792
  %v905 = vpop.f32.mrb[0].mxu0
  %v906 = vadd.f32 %v821, %v905
  %v907 = vpop.f32.mrb[0].mxu0
  %v908 = vpop.f32.mrb[0].mxu0
  %v909 = vadd.f32 %v821, %v908
  %v910 = vpop.f32.mrb[0].mxu0
  %911 = vmatprep.mubr.bf16.mxu0 0
  %912 = vmatmul.mubr.bf16.gmra.mrb[0].mxu0 %v793
  %v913 = vpop.f32.mrb[0].mxu0
  %v914 = vadd.f32 %v821, %v913
  %v915 = vpop.f32.mrb[0].mxu0
  %v916 = vpop.f32.mrb[0].mxu0
  %v917 = vadd.f32 %v821, %v916
  %v918 = vpop.f32.mrb[0].mxu0
  %919 = vmatprep.mubr.bf16.mxu0 0
  %920 = vmatmul.mubr.bf16.gmra.mrb[0].mxu0 %v794
  %v921 = vpop.f32.mrb[0].mxu0
  %v922 = vadd.f32 %v821, %v921
  %v923 = vpop.f32.mrb[0].mxu0
  %v924 = vpop.f32.mrb[0].mxu0
  %v925 = vadd.f32 %v821, %v924
  %v926 = vpop.f32.mrb[0].mxu0
  %927 = vmatprep.mubr.bf16.mxu0 0
  %928 = vmatmul.mubr.bf16.gmra.mrb[0].mxu0 %v795
  %v929 = vpop.f32.mrb[0].mxu0
  %v930 = vadd.f32 %v821, %v929
  %v931 = vpop.f32.mrb[0].mxu0
  %v932 = vpop.f32.mrb[0].mxu0
  %v933 = vadd.f32 %v821, %v932
  %v934 = vpop.f32.mrb[0].mxu0
  %935 = vmatprep.mubr.bf16.mxu0 0
  %936 = vmatmul.mubr.bf16.gmra.mrb[0].mxu0 %v796
  %v937 = vpop.f32.mrb[0].mxu0
  %v938 = vadd.f32 %v821, %v937
  %v939 = vpop.f32.mrb[0].mxu0
  %v940 = vpop.f32.mrb[0].mxu0
  %v941 = vadd.f32 %v821, %v940
  %v942 = vpop.f32.mrb[0].mxu0
  %943 = vmatprep.mubr.bf16.mxu0 0
  %944 = vmatmul.mubr.bf16.gmra.mrb[0].mxu0 %v797
  %v945 = vpop.f32.mrb[0].mxu0
  %v946 = vadd.f32 %v821, %v945
  %v947 = vpop.f32.mrb[0].mxu0
  %v948 = vpop.f32.mrb[0].mxu0
  %v949 = vadd.f32 %v821, %v948
  %v950 = vpop.f32.mrb[0].mxu0
  %951 = vmatprep.mubr.bf16.mxu0 0
  %952 = vmatmul.mubr.bf16.gmra.mrb[0].mxu0 %v798
  %v953 = vpop.f32.mrb[0].mxu0
  %v954 = vadd.f32 %v821, %v953
  %v955 = vpop.f32.mrb[0].mxu0
  %v956 = vpop.f32.mrb[0].mxu0
  %v957 = vadd.f32 %v821, %v956
  %v958 = vpop.f32.mrb[0].mxu0
  %959 = vmatprep.mubr.bf16.mxu0 0
  %960 = vmatmul.mubr.bf16.gmra.mrb[0].mxu0 %v799
  %v961 = vpop.f32.mrb[0].mxu0
  %v962 = vadd.f32 %v821, %v961
  %v963 = vpop.f32.mrb[0].mxu0
  %v964 = vpop.f32.mrb[0].mxu0
  %v965 = vadd.f32 %v821, %v964
  %v966 = vpop.f32.mrb[0].mxu0
  %967 = vdwg.mxu0
  %vm968 = vcmp.gt.f32.partialorder %v906, 0.0
  %vm969 = vcmp.gt.f32.partialorder %v909, 0.0
  %vm970 = vcmp.gt.f32.partialorder %v914, 0.0
  %vm971 = vcmp.gt.f32.partialorder %v917, 0.0
  %vm972 = vcmp.gt.f32.partialorder %v922, 0.0
  %vm973 = vcmp.gt.f32.partialorder %v925, 0.0
  %vm974 = vcmp.gt.f32.partialorder %v930, 0.0
  %vm975 = vcmp.gt.f32.partialorder %v933, 0.0
  %vm976 = vcmp.gt.f32.partialorder %v938, 0.0
  %vm977 = vcmp.gt.f32.partialorder %v941, 0.0
  %vm978 = vcmp.gt.f32.partialorder %v946, 0.0
  %vm979 = vcmp.gt.f32.partialorder %v949, 0.0
  %vm980 = vcmp.gt.f32.partialorder %v954, 0.0
  %vm981 = vcmp.gt.f32.partialorder %v957, 0.0
  %vm982 = vcmp.gt.f32.partialorder %v962, 0.0
  %vm983 = vcmp.gt.f32.partialorder %v965, 0.0
  %v984 = vmul.f32 %v906, 0.2
  %v985 = vmul.f32 %v909, 0.2
  %v986 = vmul.f32 %v914, 0.2
  %v987 = vmul.f32 %v917, 0.2
  %v988 = vmul.f32 %v922, 0.2
  %v989 = vmul.f32 %v925, 0.2
  %v990 = vmul.f32 %v930, 0.2
  %v991 = vmul.f32 %v933, 0.2
  %v992 = vmul.f32 %v938, 0.2
  %v993 = vmul.f32 %v941, 0.2
  %v994 = vmul.f32 %v946, 0.2
  %v995 = vmul.f32 %v949, 0.2
  %v996 = vmul.f32 %v954, 0.2
  %v997 = vmul.f32 %v957, 0.2
  %v998 = vmul.f32 %v962, 0.2
  %v999 = vmul.f32 %v965, 0.2
  %v1000 = vsel %vm968, %v906, %v984
  %v1001 = vsel %vm969, %v909, %v985
  %v1002 = vsel %vm970, %v914, %v986
  %v1003 = vsel %vm971, %v917, %v987
  %v1004 = vsel %vm972, %v922, %v988
  %v1005 = vsel %vm973, %v925, %v989
  %v1006 = vsel %vm974, %v930, %v990
  %v1007 = vsel %vm975, %v933, %v991
  %v1008 = vsel %vm976, %v938, %v992
  %v1009 = vsel %vm977, %v941, %v993
  %v1010 = vsel %vm978, %v946, %v994
  %v1011 = vsel %vm979, %v949, %v995
  %v1012 = vsel %vm980, %v954, %v996
  %v1013 = vsel %vm981, %v957, %v997
  %v1014 = vsel %vm982, %v962, %v998
  %v1015 = vsel %vm983, %v965, %v999
  %v1016 = vld [vmem:[%s7] sm:$0x1]
  %v1017 = vld [vmem:[#allocation2] sm:$0x1]
  %1019 = vset.pattern.permute.xlu0 0
  %1020 = vperm.xlu0 %1019, %v1017
  %v1021 = vpop.permute.xlu0 %1020
  %v1023 = vlaneseq
  %v1024 = vshrl.u32 %v1023, 7
  %v1025 = vsub.s32 0, %v1024
  %v1026 = vrot.slane %v1021, %v1025
  %vm1027 = vcmask 523264
  %v1029 = vsel %vm1027, %v1016, 0
  %v1032 = vsel %vm1027, %v1000, 0
  %v1035 = vsel %vm1027, %v1001, 0
  %v1038 = vsel %vm1027, %v1002, 0
  %v1041 = vsel %vm1027, %v1003, 0
  %v1044 = vsel %vm1027, %v1004, 0
  %v1047 = vsel %vm1027, %v1005, 0
  %v1050 = vsel %vm1027, %v1006, 0
  %v1053 = vsel %vm1027, %v1007, 0
  %v1056 = vsel %vm1027, %v1008, 0
  %v1059 = vsel %vm1027, %v1009, 0
  %v1062 = vsel %vm1027, %v1010, 0
  %v1065 = vsel %vm1027, %v1011, 0
  %v1068 = vsel %vm1027, %v1012, 0
  %v1071 = vsel %vm1027, %v1013, 0
  %v1074 = vsel %vm1027, %v1014, 0
  %v1077 = vsel %vm1027, %v1015, 0
  %1079 = vmatprep.subr.mxu0 0.0
  %1080 = vmatpush1.xpose.msra.mxu0 %v1032
  %1081 = vmatprep.subr.mxu0 0.0
  %1082 = vmatpush1.xpose.msra.mxu0 %v1035
  %1083 = vmatprep.subr.mxu0 0.0
  %1084 = vmatpush1.xpose.msra.mxu0 %v1038
  %1085 = vmatprep.subr.mxu0 0.0
  %1086 = vmatpush1.xpose.msra.mxu0 %v1041
  %1087 = vmatprep.subr.mxu0 0.0
  %1088 = vmatpush1.xpose.msra.mxu0 %v1044
  %1089 = vmatprep.subr.mxu0 0.0
  %1090 = vmatpush1.xpose.msra.mxu0 %v1047
  %1091 = vmatprep.subr.mxu0 0.0
  %1092 = vmatpush1.xpose.msra.mxu0 %v1050
  %1093 = vmatprep.subr.mxu0 0.0
  %1094 = vmatpush1.xpose.msra.mxu0 %v1053
  %1095 = vmatprep.subr.mxu0 0.0
  %1096 = vmatpush1.xpose.msra.mxu0 %v1056
  %1097 = vmatprep.subr.mxu0 0.0
  %1098 = vmatpush1.xpose.msra.mxu0 %v1059
  %1099 = vmatprep.subr.mxu0 0.0
  %1100 = vmatpush1.xpose.msra.mxu0 %v1062
  %1101 = vmatprep.subr.mxu0 0.0
  %1102 = vmatpush1.xpose.msra.mxu0 %v1065
  %1103 = vmatprep.subr.mxu0 0.0
  %1104 = vmatpush1.xpose.msra.mxu0 %v1068
  %1105 = vmatprep.subr.mxu0 0.0
  %1106 = vmatpush1.xpose.msra.mxu0 %v1071
  %1107 = vmatprep.subr.mxu0 0.0
  %1108 = vmatpush1.xpose.msra.mxu0 %v1074
  %1109 = vmatprep.subr.mxu0 0.0
  %1110 = vmatpush1.xpose.msra.mxu0 %v1077
  %1111 = vmatprep.subr.mxu0 0.0
  %1112 = vmatpush1.xpose.msra.mxu0 0.0
  %1113 = vmatprep.subr.mxu0 0.0
  %1114 = vmatpush1.xpose.msra.mxu0 0.0
  %1115 = vmatprep.subr.mxu0 0.0
  %1116 = vmatpush1.xpose.msra.mxu0 0.0
  %1117 = vmatprep.subr.mxu0 0.0
  %1118 = vmatpush1.xpose.msra.mxu0 0.0
  %1119 = vmatprep.subr.mxu0 0.0
  %1120 = vmatpush1.xpose.msra.mxu0 0.0
  %1121 = vmatprep.subr.mxu0 0.0
  %1122 = vmatpush1.xpose.msra.mxu0 0.0
  %1123 = vmatprep.subr.mxu0 0.0
  %1124 = vmatpush1.xpose.msra.mxu0 0.0
  %1125 = vmatprep.subr.mxu0 0.0
  %1126 = vmatpush1.xpose.msra.mxu0 0.0
  %1127 = vmatprep.subr.mxu0 0.0
  %1128 = vmatpush1.xpose.msra.mxu0 0.0
  %1129 = vmatprep.subr.mxu0 0.0
  %1130 = vmatpush1.xpose.msra.mxu0 0.0
  %1131 = vmatprep.subr.mxu0 0.0
  %1132 = vmatpush1.xpose.msra.mxu0 0.0
  %1133 = vmatprep.subr.mxu0 0.0
  %1134 = vmatpush1.xpose.msra.mxu0 0.0
  %1135 = vmatprep.subr.mxu0 0.0
  %1136 = vmatpush1.xpose.msra.mxu0 0.0
  %1137 = vmatprep.subr.mxu0 0.0
  %1138 = vmatpush1.xpose.msra.mxu0 0.0
  %1139 = vmatprep.subr.mxu0 0.0
  %1140 = vmatpush1.xpose.msra.mxu0 0.0
  %1141 = vmatprep.subr.mxu0 0.0
  %1142 = vmatpush1.xpose.msra.mxu0 0.0
  %1143 = vmatprep.mubr.f32.mxu0 0.0
  %1144 = vmatmul.mubr.f32.gmra.mrb[0].mxu0 %v1029
  %v1145 = vpop.f32.mrb[0].mxu0
  %v1146 = vadd.f32 %v1026, %v1145
  %v1147 = vpop.f32.mrb[0].mxu0
  %1148 = vdwg.mxu0
  %v1149 = vsub.f32 0.0, %v1146
  %v1150 = vmul.f32 %v1149, 1.442695
  %v1151 = vpow.pop %v1150
  %v1152 = vadd.f32 %v1151, 1.0
  %v1153 = vrcp.pop %v1152
  %1154 = vst [vmem:[%s9] sm:$0x1] %v1153
  // Predicated region
  $region38: #{discriminator_forward.1} parent=0 // pred_check
    _
  $region39: #{discriminator_forward.1} parent=0 // pred_check_branch
    %1156 = sbr.rel (0) target = $region41
  $region40: #{discriminator_forward.1} parent=0 // pred_region
    _
  $region41: #{discriminator_forward.1} parent=0 // pred_fallthru
    _
  // Predicated region
  $region42: #{discriminator_forward.1} parent=0 // pred_check
    _
  $region43: #{discriminator_forward.1} parent=0 // pred_check_branch
    %1158 = sbr.rel (0) target = $region45
  $region44: #{discriminator_forward.1} parent=0 // pred_region
    _
  $region45: #{discriminator_forward.1} parent=0 // pred_fallthru
    _

</llo_original>
